<compile_context>
chip_gen: v7x
topology: tpu7x:2x2x1
jax: 0.10.0
libtpu: 0.0.40
codegen_flags: <defaults>
</compile_context>

<pallas_src>
import math

import jax
import jax.numpy as jnp
from jax.experimental import pallas as pl
from jax.experimental.pallas import tpu as pltpu


def _layer_scale_kernel(x_ref, g_ref, o_ref):
    # x_ref: [TM, D] activation tile; g_ref: [1, D] gamma (resident across steps).
    o_ref[...] = x_ref[...] * g_ref[...]


def _sublane_multiple(dtype) -> int:
    # Sub-32-bit dtypes pack along sublanes: f32 -> 8, bf16 -> 16, int8/fp8 -> 32.
    return max(8, 32 // jnp.dtype(dtype).itemsize)


def _round_up(n: int, m: int) -> int:
    return ((n + m - 1) // m) * m


def layer_scale(x, gamma, *, inplace=False,
                vmem_tile_budget_bytes=12 * 1024 * 1024):
    """Pallas LayerScale.forward: x * gamma, gamma broadcast over the last dim."""
    orig_shape = x.shape
    D = orig_shape[-1]
    M = 1
    for s in orig_shape[:-1]:
        M *= s

    # Keep the multiply in the activation dtype (memory-bound op at HBM roofline).
    g = gamma.astype(x.dtype)

    # --- Lane-dense layout: if D is not a multiple of 128, fold r rows into the
    # lane axis so the output's last dim is a multiple of 128 (unmasked stores).
    r = 1
    if D % 128 != 0:
        r_needed = 128 // math.gcd(D, 128)
        if M % r_needed == 0:
            r = r_needed
    M_eff = M // r
    D_eff = D * r

    xf = x.reshape(M_eff, D_eff)
    gf = jnp.tile(g.reshape(1, D), (1, r)) if r > 1 else g.reshape(1, D)

    # --- Tile sizing: biggest TM whose double-buffered in+out tiles fit a VMEM
    # budget that is safe on every generation (v5e 16 MiB scoped default,
    # v7x 64 MiB physical / 32 MiB scoped default, v6e trivially).
    itemsize = jnp.dtype(x.dtype).itemsize
    sub = _sublane_multiple(x.dtype)
    bytes_per_row = D_eff * itemsize
    tm_max = max(sub, (vmem_tile_budget_bytes // (4 * bytes_per_row)) // sub * sub)

    tm = min(tm_max, _round_up(M_eff, sub))
    # Prefer >=2 balanced grid steps when there is enough work so the
    # "parallel" grid axis can be split across both TensorCores (v7x).
    if M_eff >= 4 * sub:
        tm = min(tm, _round_up(pl.cdiv(M_eff, 2), sub))
    if tm > M_eff:
        tm = M_eff  # single full-extent block (always a legal block shape)

    grid = (pl.cdiv(M_eff, tm),)  # ragged last block: Pallas clips the partial store

    # Scoped-VMEM limit covering 2x(in+out) tile buffers + gamma + headroom.
    vmem_needed = 4 * tm * bytes_per_row + 2 * D_eff * itemsize
    vmem_limit = min(48 * 1024 * 1024, max(2 * vmem_needed, 24 * 1024 * 1024))

    out = pl.pallas_call(
        _layer_scale_kernel,
        out_shape=jax.ShapeDtypeStruct((M_eff, D_eff), x.dtype),
        grid=grid,
        in_specs=[
            pl.BlockSpec((tm, D_eff), lambda i: (i, 0)),   # streamed activation tile
            pl.BlockSpec((1, D_eff), lambda i: (0, 0)),    # gamma resident across steps
        ],
        out_specs=pl.BlockSpec((tm, D_eff), lambda i: (i, 0)),
        compiler_params=pltpu.CompilerParams(
            dimension_semantics=("parallel",),             # megacore sharding on v7x
            vmem_limit_bytes=int(vmem_limit),
        ),
        # inplace=True -> reuse x's buffer for the output (mirrors torch x.mul_()).
        input_output_aliases=({0: 0} if inplace else {}),
    )(xf, gf)

    return out.reshape(orig_shape)


if __name__ == "__main__":
    key = jax.random.PRNGKey(0)
    k1, k2, k3, k4 = jax.random.split(key, 4)
    init_values = 1e-5

    # Case 1: ViT-like, lane-dense D=128, multi-step grid (2 tiles of 16 rows).
    B, N, D = 2, 16, 128
    x1 = jax.random.normal(k1, (B, N, D), jnp.float32)
    g1 = init_values * jnp.ones((D,), jnp.float32) \
        + 1e-3 * jax.random.normal(k2, (D,), jnp.float32)
    out1 = jax.block_until_ready(layer_scale(x1, g1))
    assert jnp.allclose(out1, x1 * g1, atol=1e-6, rtol=1e-6), "case1 mismatch"

    # Case 2: D=192 (not a multiple of 128) -> row-folding into the lane axis.
    B2, N2, D2 = 2, 12, 192
    x2 = jax.random.normal(k3, (B2, N2, D2), jnp.float32)
    g2 = init_values * jnp.ones((D2,), jnp.float32) \
        + 1e-3 * jax.random.normal(k4, (D2,), jnp.float32)
    out2 = jax.block_until_ready(layer_scale(x2, g2))
    assert jnp.allclose(out2, x2 * g2, atol=1e-6, rtol=1e-6), "case2 mismatch"

    # Case 3: ragged token count (M=120, TM=64 -> clipped last block), inplace alias.
    B3, N3, D3 = 5, 24, 128
    x3 = jax.random.normal(k1, (B3, N3, D3), jnp.float32)
    out3 = jax.block_until_ready(layer_scale(x3, g1, inplace=True))
    assert jnp.allclose(out3, x3 * g1, atol=1e-6, rtol=1e-6), "case3 mismatch"

    print("KERNEL_OK")
</pallas_src>

<mosaic_0001>
module attributes {stable_mosaic.version = 11 : i64} {
  func.func @_layer_scale_kernel(%arg0: i32, %arg1: memref<16x128xf32, #tpu.memory_space<vmem>>, %arg2: memref<1x128xf32, #tpu.memory_space<vmem>>, %arg3: memref<16x128xf32, #tpu.memory_space<vmem>>) attributes {dimension_semantics = [#tpu.dimension_semantics<parallel>], iteration_bounds = array<i64: 2>, scalar_prefetch = 0 : i64, scratch_operands = 0 : i64, tpu.core_type = #tpu.core_type<tc>, window_params = [{transform_indices = @transform_0, window_bounds = array<i64: 16, 128>}, {pipeline_mode = #tpu.pipeline_mode<synchronous>, transform_indices = @transform_1, window_bounds = array<i64: 1, 128>}, {transform_indices = @transform_2, window_bounds = array<i64: 16, 128>}]} {
    %c0 = arith.constant 0 : index
    %c0_0 = arith.constant 0 : index
    %0 = vector.load %arg1[%c0, %c0_0] : memref<16x128xf32, #tpu.memory_space<vmem>>, vector<16x128xf32>
    %c0_1 = arith.constant 0 : index
    %c0_2 = arith.constant 0 : index
    %1 = vector.load %arg2[%c0_1, %c0_2] : memref<1x128xf32, #tpu.memory_space<vmem>>, vector<1x128xf32>
    %2 = vector.broadcast %1 : vector<1x128xf32> to vector<16x128xf32>
    %3 = arith.mulf %0, %2 : vector<16x128xf32>
    %c0_3 = arith.constant 0 : index
    %c0_4 = arith.constant 0 : index
    %4 = vector.load %arg3[%c0_3, %c0_4] : memref<16x128xf32, #tpu.memory_space<vmem>>, vector<16x128xf32>
    tpu.vector_store %arg3[%c0_3, %c0_4], %3 {strides = array<i32>} : memref<16x128xf32, #tpu.memory_space<vmem>>, vector<16x128xf32>,
    return
  }
  func.func @transform_0(%arg0: i32) -> (i32, i32) {
    %c0_i32 = arith.constant 0 : i32
    %c0_i32_0 = arith.constant 0 : i32
    return %arg0, %c0_i32 : i32, i32
  }
  func.func @transform_1(%arg0: i32) -> (i32, i32) {
    %c0_i32 = arith.constant 0 : i32
    %c0_i32_0 = arith.constant 0 : i32
    %c0_i32_1 = arith.constant 0 : i32
    return %c0_i32, %c0_i32_0 : i32, i32
  }
  func.func @transform_2(%arg0: i32) -> (i32, i32) {
    %c0_i32 = arith.constant 0 : i32
    %c0_i32_0 = arith.constant 0 : i32
    return %arg0, %c0_i32 : i32, i32
  }
}

</mosaic_0001>

<llo_original>
// kernel: tpu_custom_call.1
$region0: #{tpu_custom_call.1}
  #allocation0 [shape = 'u32[]', space=smem, size = 0x4, offset = 0x4, fixed_abs, tag = 'smem constant byte address 0x4 - core index']
  #allocation1 [shape = 'u32[144,128]{1,0:T(1,128)}', space=vmem, size = 0x12000, scoped, tag = 'internal scratch']
  %s0 = inlined_call_operand.hbm [shape: f32[32,128], index: 0, kind: input, shape index: {}]
  %s1 = inlined_call_operand.vmem [shape: f32[1,128], index: 1, kind: input, shape index: {}]
  %s2 = inlined_call_operand.hbm [shape: f32[32,128], index: 2, kind: output, shape index: {}]
  %s3 = sld [smem:[#allocation0]]
  $region45: #{tpu_custom_call.1} parent=0
    _
  %s5 = ssub.s32 1, %s3
  %s6 = scalar_select 0, %s5, %s3
  $region1: #{tpu_custom_call.1} parent=0
    #allocation2 [shape = 'u8[16384]{0}', space=vmem, size = 0x4000, scoped, tag = 'input window, operand 0']
    #allocation3 [shape = 's32[2]{0}', space=sflag, size = 0x8, scoped, tag = 'scoped memory for tpu_custom_call.1']
    #allocation4 [shape = 's32[2]{0}', space=sflag, size = 0x8, scoped, tag = 'scoped memory for tpu_custom_call.1']
    #allocation5 [shape = 'u8[16384]{0}', space=vmem, size = 0x4000, scoped, tag = 'output window, operand 0']
    %7 = vsyncpa [#allocation3], 0
    %s8 = scalar_lea.sflag [#allocation3], 1
    %9 = vsyncpa %s8, 0
    %10 = vsyncpa [#allocation4], 0
    %s11 = scalar_lea.sflag [#allocation4], 1
    %12 = vsyncpa %s11, 0
    loop: start=0, step=1, limit=4
    $region2: #{tpu_custom_call.1} parent=1 // loop_pre_header
      _
    $region3: #{tpu_custom_call.1} parent=1 // loop_header
      %s14 = sphi 0, %s18
      %p15 = scmp.ge.s32.totalorder %s14, 4
      %s24 = sphi 0, %s26
      %s27 = sphi 0, %s24
      %s28 = sphi 0, %s27
      %s44 = sphi 0, %s28
      %s48 = sphi 0, %s48
      %s50 = sphi 0, %s48
      %s51 = sphi 0, %s50
      %s65 = sphi 0, %s51
      %s71 = sphi 0, %s73
      %s74 = sphi 0, %s71
      %s75 = sphi 0, %s74
      %s91 = sphi 0, %s75
    $region4: #{tpu_custom_call.1} parent=1 // loop_header_branch
      %17 = sbr.rel (%p15) target = $region8
    $region5: #{tpu_custom_call.1} parent=1 // loop_body
      %s19 = ssub.s32 %s14, 1
      %s20 = ssub.s32 %s14, 2
      %s21 = sadd.s32 %s14, 1
      %s22 = ssub.s32 %s14, %s21
      %p23 = scmp.eq.s32.totalorder %s22, 0
      %s25 = sadd.s32 %s24, 1
      %s26 = scalar_select %p23, %s24, %s25
      %p29 = pneg %p23
      %p30 = scmp.eq.s32.totalorder %s14, 1
      %p31 = por %p29, %p30
      %p32 = scmp.ne.s32.totalorder %s24, %s27
      %p33 = scmp.eq.s32.totalorder %s14, 0
      %p34 = por %p32, %p33
      %p35 = scmp.ne.s32.totalorder %s24, %s27
      %p36 = scmp.eq.s32.totalorder %s19, 1
      %p37 = por %p35, %p36
      %p38 = scmp.ne.s32.totalorder %s27, %s28
      %p39 = scmp.eq.s32.totalorder %s19, 0
      %p40 = por %p38, %p39
      %p41 = scmp.ne.s32.totalorder %s27, %s28
      %p42 = scmp.eq.s32.totalorder %s20, 1
      %p43 = por %p41, %p42
      %p45 = scmp.ne.s32.totalorder %s28, %s44
      %p46 = scmp.eq.s32.totalorder %s20, 0
      %p47 = por %p45, %p46
      %s49 = sadd.s32 %s48, 1
      %p52 = scmp.eq.s32.totalorder %s14, 1
      %p53 = scmp.ne.s32.totalorder %s48, %s50
      %p54 = scmp.eq.s32.totalorder %s14, 0
      %p55 = por %p53, %p54
      %p56 = scmp.ne.s32.totalorder %s48, %s50
      %p57 = scmp.eq.s32.totalorder %s19, 1
      %p58 = por %p56, %p57
      %p59 = scmp.ne.s32.totalorder %s50, %s51
      %p60 = scmp.eq.s32.totalorder %s19, 0
      %p61 = por %p59, %p60
      %p62 = scmp.ne.s32.totalorder %s50, %s51
      %p63 = scmp.eq.s32.totalorder %s20, 1
      %p64 = por %p62, %p63
      %p66 = scmp.ne.s32.totalorder %s51, %s65
      %p67 = scmp.eq.s32.totalorder %s20, 0
      %p68 = por %p66, %p67
      %s69 = ssub.s32 %s14, %s21
      %p70 = scmp.eq.s32.totalorder %s69, 0
      %s72 = sadd.s32 %s71, 1
      %s73 = scalar_select %p70, %s71, %s72
      %p76 = pneg %p70
      %p77 = scmp.eq.s32.totalorder %s14, 1
      %p78 = por %p76, %p77
      %p79 = scmp.ne.s32.totalorder %s71, %s74
      %p80 = scmp.eq.s32.totalorder %s14, 0
      %p81 = por %p79, %p80
      %p82 = scmp.ne.s32.totalorder %s71, %s74
      %p83 = scmp.eq.s32.totalorder %s19, 1
      %p84 = por %p82, %p83
      %p85 = scmp.ne.s32.totalorder %s74, %s75
      %p86 = scmp.eq.s32.totalorder %s19, 0
      %p87 = por %p85, %p86
      %p88 = scmp.ne.s32.totalorder %s74, %s75
      %p89 = scmp.eq.s32.totalorder %s20, 1
      %p90 = por %p88, %p89
      %p92 = scmp.ne.s32.totalorder %s75, %s91
      %p93 = scmp.eq.s32.totalorder %s20, 0
      %p94 = por %p92, %p93
      %p95 = scmp.le.s32.totalorder 1, %s14
      %p96 = scmp.lt.s32.totalorder %s14, 3
      %p97 = pnand %p95, %p96
      %p98 = pneg %p97
      // Predicated region
      $region9: #{tpu_custom_call.1} parent=5 // pred_check
        _
      $region10: #{tpu_custom_call.1} parent=5 // pred_check_branch
        %100 = sbr.rel (%p97) target = $region12
      $region11: #{tpu_custom_call.1} parent=5 // pred_region
        %s101 = ssub.s32 %s14, 1
        // Predicated region
        $region13: #{tpu_custom_call.1} parent=11 // pred_check
          %p102 = pneg %p61
        $region14: #{tpu_custom_call.1} parent=11 // pred_check_branch
          %104 = sbr.rel (%p102) target = $region16
        $region15: #{tpu_custom_call.1} parent=11 // pred_region
          _
        $region16: #{tpu_custom_call.1} parent=11 // pred_fallthru
          _
      $region12: #{tpu_custom_call.1} parent=5 // pred_fallthru
        _
      %p105 = scmp.lt.s32.totalorder %s14, 2
      // Predicated region
      $region17: #{tpu_custom_call.1} parent=5 // pred_check
        %p106 = pneg %p105
      $region18: #{tpu_custom_call.1} parent=5 // pred_check_branch
        %108 = sbr.rel (%p106) target = $region20
      $region19: #{tpu_custom_call.1} parent=5 // pred_region
        // Predicated region
        $region21: #{tpu_custom_call.1} parent=19 // pred_check
          %p109 = pneg %p34
        $region22: #{tpu_custom_call.1} parent=19 // pred_check_branch
          %111 = sbr.rel (%p109) target = $region24
        $region23: #{tpu_custom_call.1} parent=19 // pred_region
          %s112 = sand.u32 %s24, 1
          %s113 = scalar_lea.sflag [#allocation3], %s112
          %s114 = sand.u32 %s24, 1
          %s115 = smul.addr %s114, 16
          %s116 = scalar_lea.vmem [#allocation2], %s115
          %s117 = smul.u32 2, %s14
          %s119 = ssub.s32 256, 256
          %120 = vsyncadd %s113, %s119
          %s121 = smul.addr %s117, 128
          %s122 = scalar_lea.hbm %s0, %s121
          %s123 = sshll.u32 %s116, 4
          %s124 = int_to_ptr.vmem [resolvable:$true] %s123
          %129 = dma.hbm_to_vmem [thread:$0]  %s122, 256, %s124, %s113, 128, 128, 8
        $region24: #{tpu_custom_call.1} parent=19 // pred_fallthru
          _
      $region20: #{tpu_custom_call.1} parent=5 // pred_fallthru
        _
      %p130 = scmp.le.s32.totalorder 1, %s14
      %p131 = scmp.lt.s32.totalorder %s14, 3
      %p132 = pnand %p130, %p131
      %p133 = pneg %p132
      // Predicated region
      $region25: #{tpu_custom_call.1} parent=5 // pred_check
        _
      $region26: #{tpu_custom_call.1} parent=5 // pred_check_branch
        %135 = sbr.rel (%p132) target = $region28
      $region27: #{tpu_custom_call.1} parent=5 // pred_region
        %s136 = ssub.s32 %s14, 1
        %s137 = sand.u32 %s27, 1
        %s138 = scalar_lea.sflag [#allocation3], %s137
        %s139 = sand.u32 %s27, 1
        %s140 = smul.addr %s139, 16
        %s141 = scalar_lea.vmem [#allocation2], %s140
        // Predicated region
        $region29: #{tpu_custom_call.1} parent=27 // pred_check
          %p142 = pneg %p40
        $region30: #{tpu_custom_call.1} parent=27 // pred_check_branch
          %144 = sbr.rel (%p142) target = $region32
        $region31: #{tpu_custom_call.1} parent=27 // pred_region
          %145 = dma.done %s138, 256
        $region32: #{tpu_custom_call.1} parent=27 // pred_fallthru
          _
        %s146 = sand.u32 %s27, 1
        %s147 = scalar_lea.sflag [#allocation3], %s146
        %s148 = sand.u32 %s27, 1
        %s149 = smul.addr %s148, 16
        %s150 = scalar_lea.vmem [#allocation2], %s149
        %p151 = pneg %p40
        %p152 = pneg %p37
        %p153 = pneg %p61
        %p154 = pneg %p58
        %p155 = pneg %p87
        %p156 = pneg %p84
        %s157 = sand.u32 %s74, 1
        %s158 = scalar_lea.sflag [#allocation4], %s157
        %s159 = sand.u32 %s74, 1
        %s160 = smul.addr %s159, 16
        %s161 = scalar_lea.vmem [#allocation5], %s160
        %s162 = smul.u32 2, %s19
        %s163 = smul.u32 2, %s19
        %v164 = vld [vmem:[%s141] sm:$0xff]
        %v165 = vld [vmem:[%s141 + $0x8] sm:$0xff]
        %v166 = vld [vmem:[%s1] sm:$0x1]
        %v168 = vlaneseq
        %v169 = vshrl.u32 %v168, 7
        %v170 = vsub.s32 0, %v169
        %v171 = vrot.slane %v166, %v170
        %v173 = vmul.f32 %v164, %v171
        %v174 = vmul.f32 %v165, %v171
        %175 = vst [vmem:[%s161] sm:$0xff] %v173
        %176 = vst [vmem:[%s161 + $0x8] sm:$0xff] %v174
        %s177 = sand.u32 %s74, 1
        %s178 = scalar_lea.sflag [#allocation4], %s177
        %s179 = sand.u32 %s74, 1
        %s180 = smul.addr %s179, 16
        %s181 = scalar_lea.vmem [#allocation5], %s180
        // Predicated region
        $region33: #{tpu_custom_call.1} parent=27 // pred_check
          %p182 = pneg %p84
        $region34: #{tpu_custom_call.1} parent=27 // pred_check_branch
          %184 = sbr.rel (%p182) target = $region36
        $region35: #{tpu_custom_call.1} parent=27 // pred_region
          %s185 = smul.u32 2, %s19
          %s187 = ssub.s32 256, 256
          %188 = vsyncadd %s178, %s187
          %s189 = smul.addr %s185, 128
          %s190 = scalar_lea.hbm %s2, %s189
          %s191 = sshll.u32 %s181, 4
          %s192 = int_to_ptr.vmem [resolvable:$true] %s191
          %197 = dma.vmem_to_hbm [thread:$0]  %s192, 256, %s190, %s178, 128, 128, 8
        $region36: #{tpu_custom_call.1} parent=27 // pred_fallthru
          _
      $region28: #{tpu_custom_call.1} parent=5 // pred_fallthru
        _
      %p198 = scmp.le.s32.totalorder 2, %s14
      // Predicated region
      $region37: #{tpu_custom_call.1} parent=5 // pred_check
        %p199 = pneg %p198
      $region38: #{tpu_custom_call.1} parent=5 // pred_check_branch
        %201 = sbr.rel (%p199) target = $region40
      $region39: #{tpu_custom_call.1} parent=5 // pred_region
        %s202 = ssub.s32 %s14, 2
        // Predicated region
        $region41: #{tpu_custom_call.1} parent=39 // pred_check
          %p203 = pneg %p90
        $region42: #{tpu_custom_call.1} parent=39 // pred_check_branch
          %205 = sbr.rel (%p203) target = $region44
        $region43: #{tpu_custom_call.1} parent=39 // pred_region
          %s206 = sand.u32 %s75, 1
          %s207 = scalar_lea.sflag [#allocation4], %s206
          %s208 = sand.u32 %s75, 1
          %s209 = smul.addr %s208, 16
          %s210 = scalar_lea.vmem [#allocation5], %s209
          %211 = dma.done %s207, 256
        $region44: #{tpu_custom_call.1} parent=39 // pred_fallthru
          _
      $region40: #{tpu_custom_call.1} parent=5 // pred_fallthru
        _
    $region6: #{tpu_custom_call.1} parent=1 // loop_footer
      %s18 = sadd.s32 1, %s14
    $region7: #{tpu_custom_call.1} parent=1 // loop_footer_branch
      %13 = sbr.rel target = $region3
    $region8: #{tpu_custom_call.1} parent=1 // loop_exit
      _
    %212 = vsyncpa [#allocation3], 1
    %s213 = scalar_lea.sflag [#allocation3], 1
    %214 = vsyncpa %s213, 1
    %215 = vsyncpa [#allocation4], 1
    %s216 = scalar_lea.sflag [#allocation4], 1
    %217 = vsyncpa %s216, 1

</llo_original>
